<compile_context>
chip_gen: v6e
topology: v6e:2x2x1
jax: 0.10.0
libtpu: 0.0.40
codegen_flags: <defaults>
</compile_context>

<pallas_src>
import functools

import jax
import jax.numpy as jnp
from jax.experimental import pallas as pl
from jax.experimental.pallas import tpu as pltpu

NEG_SLOPE = 0.01   # nn.LeakyReLU default
LANE = 128         # TPU lane width
SUBLANE = 8        # TPU sublane granularity


def _round_up(n, m):
    return ((n + m - 1) // m) * m


def _leaky_relu(v):
    return jnp.where(v > 0, v, NEG_SLOPE * v)


def mlp_kernel(x_ref, w1t_ref, b1_ref, w2t_ref, b2_ref, o_ref):
    # x_ref: (TM, Dp); w1t: (Dp, Hp); b1: (1, Hp); w2t: (Hp, Op); b2: (1, Op)
    x = x_ref[...]
    # Linear1 (weights already transposed in wrapper: y = x @ W1^T + b1)
    h = jnp.dot(x, w1t_ref[...], preferred_element_type=jnp.float32) + b1_ref[...]
    h = _leaky_relu(h)
    # Linear2
    y = jnp.dot(h, w2t_ref[...], preferred_element_type=jnp.float32) + b2_ref[...]
    y = _leaky_relu(y)
    o_ref[...] = y.astype(o_ref.dtype)


@functools.partial(jax.jit, static_argnames=("tm",))
def mlp_layer_forward(x, w1, b1, w2, b2, *, tm=512):
    """x: (S, B, D_in) float32 -> (S, B, D_out).

    Matches MLPLayer(int hidden_dim).forward: the transpose(0,1) pair in the
    PyTorch code cancels because the net acts on the last axis only.
    """
    S, B, D_in = x.shape
    H = w1.shape[0]
    D_out = w2.shape[0]
    N = S * B
    itemsize = jnp.dtype(x.dtype).itemsize

    # ---- lane-dense padded shapes -------------------------------------------
    Dp = _round_up(D_in, LANE)
    Hp = _round_up(H, LANE)
    Op = _round_up(D_out, LANE)

    # Row tile: multiple of 8 (sublane); 512 is a multiple of the 256-row MXU
    # height on v6e/v7x and of 128 on v5e.  Shrink for tiny inputs.
    TM = max(SUBLANE, min(tm, _round_up(N, SUBLANE)))
    Np = _round_up(N, TM)

    # ---- one-time (wrapper-side) padding / weight pre-transpose -------------
    x2d = x.reshape(N, D_in)
    if Np == N and Dp == D_in:
        x_p = x2d                                       # already aligned: no copy
    else:
        x_p = jnp.zeros((Np, Dp), x.dtype).at[:N, :D_in].set(x2d)
    w1t = jnp.zeros((Dp, Hp), w1.dtype).at[:D_in, :H].set(w1.T)   # (D_in,H) padded
    b1p = jnp.zeros((1, Hp), b1.dtype).at[:, :H].set(b1.reshape(1, H))
    w2t = jnp.zeros((Hp, Op), w2.dtype).at[:H, :D_out].set(w2.T)  # (H,D_out) padded
    b2p = jnp.zeros((1, Op), b2.dtype).at[:, :D_out].set(b2.reshape(1, D_out))

    grid = (Np // TM,)

    # VMEM budget: double-buffered x/out tiles + resident (double-buffered)
    # weights/biases, with margin.  Kept well under the 32 MiB scoped limit so
    # it is safe on v5e/v6e/v7x alike.
    tile_bytes = (
        2 * TM * (Dp + Op) * itemsize
        + 2 * (Dp * Hp + Hp * Op + Hp + Op) * itemsize
    )
    vmem_limit = min(32 << 20, max(2 * tile_bytes + (4 << 20), 16 << 20))

    out_p = pl.pallas_call(
        mlp_kernel,
        out_shape=jax.ShapeDtypeStruct((Np, Op), x.dtype),
        grid_spec=pltpu.PrefetchScalarGridSpec(
            num_scalar_prefetch=0,
            grid=grid,
            in_specs=[
                pl.BlockSpec((TM, Dp), lambda i: (i, 0)),   # x: row-tiled
                pl.BlockSpec((Dp, Hp), lambda i: (0, 0)),   # W1^T: resident
                pl.BlockSpec((1, Hp), lambda i: (0, 0)),    # b1: resident
                pl.BlockSpec((Hp, Op), lambda i: (0, 0)),   # W2^T: resident
                pl.BlockSpec((1, Op), lambda i: (0, 0)),    # b2: resident
            ],
            out_specs=pl.BlockSpec((TM, Op), lambda i: (i, 0)),
        ),
        compiler_params=pltpu.CompilerParams(
            dimension_semantics=("parallel",),   # rows shard across TCs on v7x
            vmem_limit_bytes=int(vmem_limit),
        ),
    )(x_p, w1t, b1p, w2t, b2p)

    # Slice off row/lane padding and restore (S, B, D_out).
    return out_p[:N, :D_out].reshape(S, B, D_out)


def init_params(key, input_dim, hidden_dim, output_dim):
    """Deterministic init matching nn.Linear shapes (out_features, in_features)."""
    k1, k2, k3, k4 = jax.random.split(key, 4)
    lim1 = 1.0 / jnp.sqrt(input_dim)
    lim2 = 1.0 / jnp.sqrt(hidden_dim)
    w1 = jax.random.uniform(k1, (hidden_dim, input_dim), jnp.float32, -lim1, lim1)
    b1 = jax.random.uniform(k2, (1, hidden_dim), jnp.float32, -lim1, lim1)
    w2 = jax.random.uniform(k3, (output_dim, hidden_dim), jnp.float32, -lim2, lim2)
    b2 = jax.random.uniform(k4, (1, output_dim), jnp.float32, -lim2, lim2)
    return w1, b1, w2, b2


def reference_forward(x, w1, b1, w2, b2):
    h = _leaky_relu(jnp.einsum("sbi,hi->sbh", x, w1) + b1[0])
    y = _leaky_relu(jnp.einsum("sbh,oh->sbo", h, w2) + b2[0])
    return y


if __name__ == "__main__":
    # Small shapes: seq=8, batch=2, input_dim=16, hidden=32, output_dim=16
    S, B, D_IN, H, D_OUT = 8, 2, 16, 32, 16

    key = jax.random.PRNGKey(0)
    kx, kp = jax.random.split(key)
    x = jax.random.normal(kx, (S, B, D_IN), jnp.float32)
    w1, b1, w2, b2 = init_params(kp, D_IN, H, D_OUT)

    out = mlp_layer_forward(x, w1, b1, w2, b2)
    out = jax.block_until_ready(out)

    ref = reference_forward(x, w1, b1, w2, b2)
    assert out.shape == (S, B, D_OUT)
    assert jnp.allclose(out, ref, atol=1e-5, rtol=1e-5), "mismatch vs reference"

    # TODO(synk): tuple hidden_dim (3-Linear) and is_cls (row Softmax) variants
    # not exercised here; same row-tiled kernel pattern with one extra matmul /
    # an in-tile softmax would cover them.
    print("KERNEL_OK")
</pallas_src>

<mosaic_0001>
module attributes {stable_mosaic.version = 11 : i64} {
  func.func @mlp_kernel(%arg0: i32, %arg1: memref<16x128xf32, #tpu.memory_space<vmem>>, %arg2: memref<128x128xf32, #tpu.memory_space<vmem>>, %arg3: memref<1x128xf32, #tpu.memory_space<vmem>>, %arg4: memref<128x128xf32, #tpu.memory_space<vmem>>, %arg5: memref<1x128xf32, #tpu.memory_space<vmem>>, %arg6: memref<16x128xf32, #tpu.memory_space<vmem>>) attributes {dimension_semantics = [#tpu.dimension_semantics<parallel>], iteration_bounds = array<i64: 1>, scalar_prefetch = 0 : i64, scratch_operands = 0 : i64, tpu.core_type = #tpu.core_type<tc>, window_params = [{transform_indices = @transform_0, window_bounds = array<i64: 16, 128>}, {pipeline_mode = #tpu.pipeline_mode<synchronous>, transform_indices = @transform_1, window_bounds = array<i64: 128, 128>}, {pipeline_mode = #tpu.pipeline_mode<synchronous>, transform_indices = @transform_2, window_bounds = array<i64: 1, 128>}, {pipeline_mode = #tpu.pipeline_mode<synchronous>, transform_indices = @transform_3, window_bounds = array<i64: 128, 128>}, {pipeline_mode = #tpu.pipeline_mode<synchronous>, transform_indices = @transform_4, window_bounds = array<i64: 1, 128>}, {transform_indices = @transform_5, window_bounds = array<i64: 16, 128>}]} {
    %c0 = arith.constant 0 : index
    %c0_0 = arith.constant 0 : index
    %0 = vector.load %arg1[%c0, %c0_0] : memref<16x128xf32, #tpu.memory_space<vmem>>, vector<16x128xf32>
    %c0_1 = arith.constant 0 : index
    %c0_2 = arith.constant 0 : index
    %1 = vector.load %arg2[%c0_1, %c0_2] : memref<128x128xf32, #tpu.memory_space<vmem>>, vector<128x128xf32>
    %cst = arith.constant dense<0.000000e+00> : vector<16x128xf32>
    %2 = tpu.matmul %0, %1, %cst {dimension_numbers = #tpu.dot_dimension_numbers<[1], [0], [0], [1], [0, 0, 1, 1], [], []>} : vector<16x128xf32>, vector<128x128xf32>, vector<16x128xf32> -> vector<16x128xf32>
    %c0_3 = arith.constant 0 : index
    %c0_4 = arith.constant 0 : index
    %3 = vector.load %arg3[%c0_3, %c0_4] : memref<1x128xf32, #tpu.memory_space<vmem>>, vector<1x128xf32>
    %4 = vector.broadcast %3 : vector<1x128xf32> to vector<16x128xf32>
    %5 = arith.addf %2, %4 : vector<16x128xf32>
    %cst_5 = arith.constant 0.000000e+00 : f32
    %6 = vector.broadcast %cst_5 : f32 to vector<16x128xf32>
    %7 = arith.cmpf ogt, %5, %6 : vector<16x128xf32>
    %cst_6 = arith.constant 0.00999999977 : f32
    %8 = vector.broadcast %cst_6 : f32 to vector<16x128xf32>
    %9 = arith.mulf %8, %5 : vector<16x128xf32>
    %10 = arith.select %7, %5, %9 : vector<16x128xi1>, vector<16x128xf32>
    %c0_7 = arith.constant 0 : index
    %c0_8 = arith.constant 0 : index
    %11 = vector.load %arg4[%c0_7, %c0_8] : memref<128x128xf32, #tpu.memory_space<vmem>>, vector<128x128xf32>
    %cst_9 = arith.constant dense<0.000000e+00> : vector<16x128xf32>
    %12 = tpu.matmul %10, %11, %cst_9 {dimension_numbers = #tpu.dot_dimension_numbers<[1], [0], [0], [1], [0, 0, 1, 1], [], []>} : vector<16x128xf32>, vector<128x128xf32>, vector<16x128xf32> -> vector<16x128xf32>
    %c0_10 = arith.constant 0 : index
    %c0_11 = arith.constant 0 : index
    %13 = vector.load %arg5[%c0_10, %c0_11] : memref<1x128xf32, #tpu.memory_space<vmem>>, vector<1x128xf32>
    %14 = vector.broadcast %13 : vector<1x128xf32> to vector<16x128xf32>
    %15 = arith.addf %12, %14 : vector<16x128xf32>
    %cst_12 = arith.constant 0.000000e+00 : f32
    %16 = vector.broadcast %cst_12 : f32 to vector<16x128xf32>
    %17 = arith.cmpf ogt, %15, %16 : vector<16x128xf32>
    %cst_13 = arith.constant 0.00999999977 : f32
    %18 = vector.broadcast %cst_13 : f32 to vector<16x128xf32>
    %19 = arith.mulf %18, %15 : vector<16x128xf32>
    %20 = arith.select %17, %15, %19 : vector<16x128xi1>, vector<16x128xf32>
    %c0_14 = arith.constant 0 : index
    %c0_15 = arith.constant 0 : index
    %21 = vector.load %arg6[%c0_14, %c0_15] : memref<16x128xf32, #tpu.memory_space<vmem>>, vector<16x128xf32>
    tpu.vector_store %arg6[%c0_14, %c0_15], %20 {strides = array<i32>} : memref<16x128xf32, #tpu.memory_space<vmem>>, vector<16x128xf32>,
    return
  }
  func.func @transform_0(%arg0: i32) -> (i32, i32) {
    %c0_i32 = arith.constant 0 : i32
    %c0_i32_0 = arith.constant 0 : i32
    return %arg0, %c0_i32 : i32, i32
  }
  func.func @transform_1(%arg0: i32) -> (i32, i32) {
    %c0_i32 = arith.constant 0 : i32
    %c0_i32_0 = arith.constant 0 : i32
    %c0_i32_1 = arith.constant 0 : i32
    return %c0_i32, %c0_i32_0 : i32, i32
  }
  func.func @transform_2(%arg0: i32) -> (i32, i32) {
    %c0_i32 = arith.constant 0 : i32
    %c0_i32_0 = arith.constant 0 : i32
    %c0_i32_1 = arith.constant 0 : i32
    return %c0_i32, %c0_i32_0 : i32, i32
  }
  func.func @transform_3(%arg0: i32) -> (i32, i32) {
    %c0_i32 = arith.constant 0 : i32
    %c0_i32_0 = arith.constant 0 : i32
    %c0_i32_1 = arith.constant 0 : i32
    return %c0_i32, %c0_i32_0 : i32, i32
  }
  func.func @transform_4(%arg0: i32) -> (i32, i32) {
    %c0_i32 = arith.constant 0 : i32
    %c0_i32_0 = arith.constant 0 : i32
    %c0_i32_1 = arith.constant 0 : i32
    return %c0_i32, %c0_i32_0 : i32, i32
  }
  func.func @transform_5(%arg0: i32) -> (i32, i32) {
    %c0_i32 = arith.constant 0 : i32
    %c0_i32_0 = arith.constant 0 : i32
    return %arg0, %c0_i32 : i32, i32
  }
}

</mosaic_0001>

<llo_original>
// kernel: mlp_layer_forward.1
$region0: #{mlp_layer_forward.1}
  #allocation0 [shape = 'u32[]', space=smem, size = 0x4, offset = 0x4, fixed_abs, tag = 'smem constant byte address 0x4 - core index']
  #allocation1 [shape = 'u32[144,128]{1,0:T(1,128)}', space=vmem, size = 0x12000, scoped, tag = 'internal scratch']
  %s0 = inlined_call_operand.vmem [shape: f32[16,128], index: 0, kind: input, shape index: {}]
  %s1 = inlined_call_operand.vmem [shape: f32[128,128], index: 1, kind: input, shape index: {}]
  %s2 = inlined_call_operand.vmem [shape: f32[1,128], index: 2, kind: input, shape index: {}]
  %s3 = inlined_call_operand.vmem [shape: f32[128,128], index: 3, kind: input, shape index: {}]
  %s4 = inlined_call_operand.vmem [shape: f32[1,128], index: 4, kind: input, shape index: {}]
  %s5 = inlined_call_operand.hbm [shape: f32[16,128], index: 5, kind: output, shape index: {}]
  %s6 = sld [smem:[#allocation0]]
  $region30: #{mlp_layer_forward.1} parent=0
    _
  %s8 = ssub.s32 1, %s6
  %s9 = scalar_select 0, %s8, %s6
  $region1: #{mlp_layer_forward.1} parent=0
    #allocation2 [shape = 'u8[8192]{0}', space=vmem, size = 0x2000, scoped, tag = 'output window, operand 0, single buffered']
    #allocation3 [shape = 's32[1]{0}', space=sflag, size = 0x4, scoped, tag = 'scoped memory for mlp_layer_forward.1']
    %10 = vsyncpa [#allocation3], 0
    // Predicated region
    $region2: #{mlp_layer_forward.1} parent=1 // pred_check
      _
    $region3: #{mlp_layer_forward.1} parent=1 // pred_check_branch
      %12 = sbr.rel (0) target = $region5
    $region4: #{mlp_layer_forward.1} parent=1 // pred_region
      _
    $region5: #{mlp_layer_forward.1} parent=1 // pred_fallthru
      _
    // Predicated region
    $region6: #{mlp_layer_forward.1} parent=1 // pred_check
      _
    $region7: #{mlp_layer_forward.1} parent=1 // pred_check_branch
      %14 = sbr.rel (0) target = $region9
    $region8: #{mlp_layer_forward.1} parent=1 // pred_region
      _
    $region9: #{mlp_layer_forward.1} parent=1 // pred_fallthru
      _
    // Predicated region
    $region10: #{mlp_layer_forward.1} parent=1 // pred_check
      _
    $region11: #{mlp_layer_forward.1} parent=1 // pred_check_branch
      %16 = sbr.rel (0) target = $region13
    $region12: #{mlp_layer_forward.1} parent=1 // pred_region
      _
    $region13: #{mlp_layer_forward.1} parent=1 // pred_fallthru
      _
    // Predicated region
    $region14: #{mlp_layer_forward.1} parent=1 // pred_check
      _
    $region15: #{mlp_layer_forward.1} parent=1 // pred_check_branch
      %18 = sbr.rel (0) target = $region17
    $region16: #{mlp_layer_forward.1} parent=1 // pred_region
      _
    $region17: #{mlp_layer_forward.1} parent=1 // pred_fallthru
      _
    // Predicated region
    $region18: #{mlp_layer_forward.1} parent=1 // pred_check
      _
    $region19: #{mlp_layer_forward.1} parent=1 // pred_check_branch
      %20 = sbr.rel (0) target = $region21
    $region20: #{mlp_layer_forward.1} parent=1 // pred_region
      _
    $region21: #{mlp_layer_forward.1} parent=1 // pred_fallthru
      _
    %v21 = vld [vmem:[%s0] sm:$0xff]
    %v22 = vld [vmem:[%s0 + $0x8] sm:$0xff]
    %v23 = vld [vmem:[%s1] sm:$0xff]
    %v24 = vld [vmem:[%s1 + $0x8] sm:$0xff]
    %v25 = vld [vmem:[%s1 + $0x10] sm:$0xff]
    %v26 = vld [vmem:[%s1 + $0x18] sm:$0xff]
    %v27 = vld [vmem:[%s1 + $0x20] sm:$0xff]
    %v28 = vld [vmem:[%s1 + $0x28] sm:$0xff]
    %v29 = vld [vmem:[%s1 + $0x30] sm:$0xff]
    %v30 = vld [vmem:[%s1 + $0x38] sm:$0xff]
    %v31 = vld [vmem:[%s1 + $0x40] sm:$0xff]
    %v32 = vld [vmem:[%s1 + $0x48] sm:$0xff]
    %v33 = vld [vmem:[%s1 + $0x50] sm:$0xff]
    %v34 = vld [vmem:[%s1 + $0x58] sm:$0xff]
    %v35 = vld [vmem:[%s1 + $0x60] sm:$0xff]
    %v36 = vld [vmem:[%s1 + $0x68] sm:$0xff]
    %v37 = vld [vmem:[%s1 + $0x70] sm:$0xff]
    %v38 = vld [vmem:[%s1 + $0x78] sm:$0xff]
    %v39 = vld [vmem:[%s2] sm:$0x1]
    %v41 = vlaneseq
    %v42 = vshrl.u32 %v41, 7
    %v43 = vsub.s32 0, %v42
    %v44 = vrot.slane %v39, %v43
    %46 = vmatprep.subr.mxu0 0.0
    %47 = vmatpush1.msra.mxu0 %v38
    %48 = vmatprep.subr.mxu0 0.0
    %49 = vmatpush1.msra.mxu0 %v37
    %50 = vmatprep.subr.mxu0 0.0
    %51 = vmatpush1.msra.mxu0 %v36
    %52 = vmatprep.subr.mxu0 0.0
    %53 = vmatpush1.msra.mxu0 %v35
    %54 = vmatprep.subr.mxu0 0.0
    %55 = vmatpush1.msra.mxu0 %v34
    %56 = vmatprep.subr.mxu0 0.0
    %57 = vmatpush1.msra.mxu0 %v33
    %58 = vmatprep.subr.mxu0 0.0
    %59 = vmatpush1.msra.mxu0 %v32
    %60 = vmatprep.subr.mxu0 0.0
    %61 = vmatpush1.msra.mxu0 %v31
    %62 = vmatprep.subr.mxu0 0.0
    %63 = vmatpush1.msra.mxu0 %v30
    %64 = vmatprep.subr.mxu0 0.0
    %65 = vmatpush1.msra.mxu0 %v29
    %66 = vmatprep.subr.mxu0 0.0
    %67 = vmatpush1.msra.mxu0 %v28
    %68 = vmatprep.subr.mxu0 0.0
    %69 = vmatpush1.msra.mxu0 %v27
    %70 = vmatprep.subr.mxu0 0.0
    %71 = vmatpush1.msra.mxu0 %v26
    %72 = vmatprep.subr.mxu0 0.0
    %73 = vmatpush1.msra.mxu0 %v25
    %74 = vmatprep.subr.mxu0 0.0
    %75 = vmatpush1.msra.mxu0 %v24
    %76 = vmatprep.subr.mxu0 0.0
    %77 = vmatpush1.msra.mxu0 %v23
    %78 = vmatprep.subr.mxu0 0.0
    %79 = vmatpush2.msra.mxu0 0.0
    %80 = vmatprep.subr.mxu0 0.0
    %81 = vmatpush2.msra.mxu0 0.0
    %82 = vmatprep.subr.mxu0 0.0
    %83 = vmatpush2.msra.mxu0 0.0
    %84 = vmatprep.subr.mxu0 0.0
    %85 = vmatpush2.msra.mxu0 0.0
    %86 = vmatprep.subr.mxu0 0.0
    %87 = vmatpush2.msra.mxu0 0.0
    %88 = vmatprep.subr.mxu0 0.0
    %89 = vmatpush2.msra.mxu0 0.0
    %90 = vmatprep.subr.mxu0 0.0
    %91 = vmatpush2.msra.mxu0 0.0
    %92 = vmatprep.subr.mxu0 0.0
    %93 = vmatpush2.msra.mxu0 0.0
    %94 = vmatprep.subr.mxu0 0.0
    %95 = vmatpush2.msra.mxu0 0.0
    %96 = vmatprep.subr.mxu0 0.0
    %97 = vmatpush2.msra.mxu0 0.0
    %98 = vmatprep.subr.mxu0 0.0
    %99 = vmatpush2.msra.mxu0 0.0
    %100 = vmatprep.subr.mxu0 0.0
    %101 = vmatpush2.msra.mxu0 0.0
    %102 = vmatprep.subr.mxu0 0.0
    %103 = vmatpush2.msra.mxu0 0.0
    %104 = vmatprep.subr.mxu0 0.0
    %105 = vmatpush2.msra.mxu0 0.0
    %106 = vmatprep.subr.mxu0 0.0
    %107 = vmatpush2.msra.mxu0 0.0
    %108 = vmatprep.subr.mxu0 0.0
    %109 = vmatpush2.msra.mxu0 0.0
    %110 = vmatprep.mubr.f32.mxu0 0.0
    %111 = vmatmul.mubr.f32.gmra.mxu0 %v21
    %v112 = vpop.f32.mrf.mxu0
    %v113 = vadd.f32 %v44, %v112
    %v114 = vpop.f32.mrf.mxu0
    %115 = vmatprep.mubr.f32.mxu0 0.0
    %116 = vmatmul.mubr.f32.gmra.mxu0 %v22
    %v117 = vpop.f32.mrf.mxu0
    %v118 = vadd.f32 %v44, %v117
    %v119 = vpop.f32.mrf.mxu0
    %120 = vdwg.mxu0
    %vm121 = vcmp.gt.f32.partialorder %v113, 0.0
    %vm122 = vcmp.gt.f32.partialorder %v118, 0.0
    %v123 = vmul.f32 %v113, 0.01
    %v124 = vmul.f32 %v118, 0.01
    %v125 = vsel %vm121, %v113, %v123
    %v126 = vsel %vm122, %v118, %v124
    %v127 = vld [vmem:[%s3] sm:$0xff]
    %v128 = vld [vmem:[%s3 + $0x8] sm:$0xff]
    %v129 = vld [vmem:[%s3 + $0x10] sm:$0xff]
    %v130 = vld [vmem:[%s3 + $0x18] sm:$0xff]
    %v131 = vld [vmem:[%s3 + $0x20] sm:$0xff]
    %v132 = vld [vmem:[%s3 + $0x28] sm:$0xff]
    %v133 = vld [vmem:[%s3 + $0x30] sm:$0xff]
    %v134 = vld [vmem:[%s3 + $0x38] sm:$0xff]
    %v135 = vld [vmem:[%s3 + $0x40] sm:$0xff]
    %v136 = vld [vmem:[%s3 + $0x48] sm:$0xff]
    %v137 = vld [vmem:[%s3 + $0x50] sm:$0xff]
    %v138 = vld [vmem:[%s3 + $0x58] sm:$0xff]
    %v139 = vld [vmem:[%s3 + $0x60] sm:$0xff]
    %v140 = vld [vmem:[%s3 + $0x68] sm:$0xff]
    %v141 = vld [vmem:[%s3 + $0x70] sm:$0xff]
    %v142 = vld [vmem:[%s3 + $0x78] sm:$0xff]
    %v143 = vld [vmem:[%s4] sm:$0x1]
    %v145 = vlaneseq
    %v146 = vshrl.u32 %v145, 7
    %v147 = vsub.s32 0, %v146
    %v148 = vrot.slane %v143, %v147
    %150 = vmatprep.subr.mxu0 0.0
    %151 = vmatpush1.msra.mxu0 %v142
    %152 = vmatprep.subr.mxu0 0.0
    %153 = vmatpush1.msra.mxu0 %v141
    %154 = vmatprep.subr.mxu0 0.0
    %155 = vmatpush1.msra.mxu0 %v140
    %156 = vmatprep.subr.mxu0 0.0
    %157 = vmatpush1.msra.mxu0 %v139
    %158 = vmatprep.subr.mxu0 0.0
    %159 = vmatpush1.msra.mxu0 %v138
    %160 = vmatprep.subr.mxu0 0.0
    %161 = vmatpush1.msra.mxu0 %v137
    %162 = vmatprep.subr.mxu0 0.0
    %163 = vmatpush1.msra.mxu0 %v136
    %164 = vmatprep.subr.mxu0 0.0
    %165 = vmatpush1.msra.mxu0 %v135
    %166 = vmatprep.subr.mxu0 0.0
    %167 = vmatpush1.msra.mxu0 %v134
    %168 = vmatprep.subr.mxu0 0.0
    %169 = vmatpush1.msra.mxu0 %v133
    %170 = vmatprep.subr.mxu0 0.0
    %171 = vmatpush1.msra.mxu0 %v132
    %172 = vmatprep.subr.mxu0 0.0
    %173 = vmatpush1.msra.mxu0 %v131
    %174 = vmatprep.subr.mxu0 0.0
    %175 = vmatpush1.msra.mxu0 %v130
    %176 = vmatprep.subr.mxu0 0.0
    %177 = vmatpush1.msra.mxu0 %v129
    %178 = vmatprep.subr.mxu0 0.0
    %179 = vmatpush1.msra.mxu0 %v128
    %180 = vmatprep.subr.mxu0 0.0
    %181 = vmatpush1.msra.mxu0 %v127
    %182 = vmatprep.subr.mxu0 0.0
    %183 = vmatpush2.msra.mxu0 0.0
    %184 = vmatprep.subr.mxu0 0.0
    %185 = vmatpush2.msra.mxu0 0.0
    %186 = vmatprep.subr.mxu0 0.0
    %187 = vmatpush2.msra.mxu0 0.0
    %188 = vmatprep.subr.mxu0 0.0
    %189 = vmatpush2.msra.mxu0 0.0
    %190 = vmatprep.subr.mxu0 0.0
    %191 = vmatpush2.msra.mxu0 0.0
    %192 = vmatprep.subr.mxu0 0.0
    %193 = vmatpush2.msra.mxu0 0.0
    %194 = vmatprep.subr.mxu0 0.0
    %195 = vmatpush2.msra.mxu0 0.0
    %196 = vmatprep.subr.mxu0 0.0
    %197 = vmatpush2.msra.mxu0 0.0
    %198 = vmatprep.subr.mxu0 0.0
    %199 = vmatpush2.msra.mxu0 0.0
    %200 = vmatprep.subr.mxu0 0.0
    %201 = vmatpush2.msra.mxu0 0.0
    %202 = vmatprep.subr.mxu0 0.0
    %203 = vmatpush2.msra.mxu0 0.0
    %204 = vmatprep.subr.mxu0 0.0
    %205 = vmatpush2.msra.mxu0 0.0
    %206 = vmatprep.subr.mxu0 0.0
    %207 = vmatpush2.msra.mxu0 0.0
    %208 = vmatprep.subr.mxu0 0.0
    %209 = vmatpush2.msra.mxu0 0.0
    %210 = vmatprep.subr.mxu0 0.0
    %211 = vmatpush2.msra.mxu0 0.0
    %212 = vmatprep.subr.mxu0 0.0
    %213 = vmatpush2.msra.mxu0 0.0
    %214 = vmatprep.mubr.f32.mxu0 0.0
    %215 = vmatmul.mubr.f32.gmra.mxu0 %v125
    %v216 = vpop.f32.mrf.mxu0
    %v217 = vadd.f32 %v148, %v216
    %v218 = vpop.f32.mrf.mxu0
    %219 = vmatprep.mubr.f32.mxu0 0.0
    %220 = vmatmul.mubr.f32.gmra.mxu0 %v126
    %v221 = vpop.f32.mrf.mxu0
    %v222 = vadd.f32 %v148, %v221
    %v223 = vpop.f32.mrf.mxu0
    %224 = vdwg.mxu0
    %vm225 = vcmp.gt.f32.partialorder %v217, 0.0
    %vm226 = vcmp.gt.f32.partialorder %v222, 0.0
    %v227 = vmul.f32 %v217, 0.01
    %v228 = vmul.f32 %v222, 0.01
    %v229 = vsel %vm225, %v217, %v227
    %v230 = vsel %vm226, %v222, %v228
    %231 = vst [vmem:[#allocation2] sm:$0xff] %v229
    %232 = vst [vmem:[#allocation2 + $0x8] sm:$0xff] %v230
    // Predicated region
    $region22: #{mlp_layer_forward.1} parent=1 // pred_check
      _
    $region23: #{mlp_layer_forward.1} parent=1 // pred_check_branch
      %234 = sbr.rel (0) target = $region25
    $region24: #{mlp_layer_forward.1} parent=1 // pred_region
      %s236 = ssub.s32 256, 256
      %237 = vsyncadd [#allocation3], %s236
      %s238 = sshll.u32 [#allocation2], 4
      %s239 = int_to_ptr.vmem [resolvable:$true] %s238
      %244 = dma.vmem_to_hbm [thread:$0]  %s239, 256, %s5, [#allocation3], 128, 128, 8
    $region25: #{mlp_layer_forward.1} parent=1 // pred_fallthru
      _
    // Predicated region
    $region26: #{mlp_layer_forward.1} parent=1 // pred_check
      _
    $region27: #{mlp_layer_forward.1} parent=1 // pred_check_branch
      %246 = sbr.rel (0) target = $region29
    $region28: #{mlp_layer_forward.1} parent=1 // pred_region
      %247 = dma.done [#allocation3], 256
    $region29: #{mlp_layer_forward.1} parent=1 // pred_fallthru
      _
    %248 = vsyncpa [#allocation3], 1

</llo_original>
